<compile_context>
chip_gen: v7x
topology: tpu7x:2x2x1
jax: 0.10.0
libtpu: 0.0.40
codegen_flags: <defaults>
</compile_context>

<pallas_src>
import functools

import jax
import jax.numpy as jnp
from jax.experimental import pallas as pl
from jax.experimental.pallas import tpu as pltpu


def _round_up(x, m):
    return ((x + m - 1) // m) * m


# ------------------------------- Pallas kernel -------------------------------
def _contract_kernel(x_ref, sel_ref, o_ref, *, s, w, wo, wo_pad):
    # x_ref:   [tm, s*W]        rows of the (c, ho)-flattened input image
    # sel_ref: [W, s*Wo_pad]    shared (sh-independent) 0/1 lane-permutation matrix
    # o_ref:   [s*s, tm, Wo]    per-(sh, sw) output chunks
    xv = x_ref[...]
    sel = sel_ref[...]
    for sh in range(s):                               # static, unrolled (s iters)
        xt = xv[:, sh * w:(sh + 1) * w]               # contiguous W-lane group
        # 0/1 selection is exact in the output dtype -> accumulate natively;
        # the MXU is otherwise idle in this memory-bound kernel.
        p = jnp.dot(xt, sel, preferred_element_type=o_ref.dtype)
        for sw in range(s):                           # static, unrolled
            # sw * wo_pad is a multiple of 128 -> lane-aligned slice start
            o_ref[sh * s + sw, :, :] = p[:, sw * wo_pad: sw * wo_pad + wo]


def _selection_matrix(s, w, wo_pad, dtype):
    """sel[l, q] == 1  iff  q = sw*Wo_pad + wq,  wq < Wo,  l == s*wq + sw."""
    wo = w // s
    l_idx = jnp.arange(w)[:, None]                    # [W, 1]
    q_idx = jnp.arange(s * wo_pad)[None, :]           # [1, s*Wo_pad]
    sw, wq = q_idx // wo_pad, q_idx % wo_pad
    return ((wq < wo) & (l_idx == s * wq + sw)).astype(dtype)


# ------------------------------ Module wrapper --------------------------------
@functools.partial(jax.jit, static_argnames=("gain", "row_tile"))
def contract(x, *, gain=2, row_tile=512):
    """Pallas Contract.forward: [N, C, H, W] -> [N, C*g*g, H//g, W//g]."""
    N, C, H, W = x.shape
    s = gain
    assert H % s == 0 and W % s == 0, "H and W must be divisible by gain"
    Ho, Wo = H // s, W // s
    R = C * Ho                        # rows per image in the 2-D view
    L = s * W                         # lanes per row

    if not jnp.issubdtype(x.dtype, jnp.floating):
        # TODO(synk): integer inputs skip the MXU 0/1-selection path (no int MXU
        # on v7x; f32 accumulation rounds int32 > 2^24) and use plain XLA.
        x6 = x.reshape(N, C, Ho, s, Wo, s)
        x6 = jnp.transpose(x6, (0, 3, 5, 1, 2, 4))
        return x6.reshape(N, C * s * s, Ho, Wo)

    Wo_pad = _round_up(Wo, 128)       # lane-aligned per-sw column groups
    itemsize = jnp.dtype(x.dtype).itemsize

    # --- row tile: as big as the VMEM budget allows.
    tm = R if R <= row_tile else max(8, (row_tile // 8) * 8)
    # Keep double-buffered in/out tiles + sel well under the 32 MiB scoped
    # default (fits v7x too after the factored/padded sel).
    vmem_budget = 24 << 20
    sel_bytes = 2 * W * s * Wo_pad * itemsize
    per_row = 2 * (L + s * s * Wo) * itemsize
    tm_cap = (vmem_budget - sel_bytes) // max(per_row, 1)
    tm_cap = max(8, (tm_cap // 8) * 8)
    tm = min(tm, tm_cap)
    # v7x has 2 TensorCores: make sure a single-image call still produces >= 2
    # "parallel" grid steps so both cores get work.
    if N * pl.cdiv(R, tm) < 2 and R > 8:
        tm = max(8, _round_up(-(-R // 2), 8))

    grid = (N, pl.cdiv(R, tm))

    # Free reshape: x2[n, c*Ho + ho, sh*W + w_full] = x[n, c, ho*s + sh, w_full]
    x2 = x.reshape(N, R, L)
    sel = _selection_matrix(s, W, Wo_pad, x.dtype)

    y4 = pl.pallas_call(
        functools.partial(_contract_kernel, s=s, w=W, wo=Wo, wo_pad=Wo_pad),
        out_shape=jax.ShapeDtypeStruct((N, s * s, R, Wo), x.dtype),
        grid_spec=pltpu.PrefetchScalarGridSpec(
            num_scalar_prefetch=0,
            grid=grid,
            in_specs=[
                pl.BlockSpec((None, tm, L), lambda n, i: (n, i, 0)),
                # constant index_map -> fetched once, buffer reused every step
                pl.BlockSpec((W, s * Wo_pad), lambda n, i: (0, 0)),
            ],
            out_specs=pl.BlockSpec((None, s * s, tm, Wo), lambda n, i: (n, 0, i, 0)),
        ),
        compiler_params=pltpu.CompilerParams(
            dimension_semantics=("parallel", "parallel"),
        ),
    )(x2, sel)

    # Free reshape back: row = chunk*C*Ho + c*Ho + ho == (chunk*C + c)*Ho + ho
    return y4.reshape(N, C * s * s, Ho, Wo)


# --------------------------- Pure-JAX reference -------------------------------
def _reference(x, gain=2):
    N, C, H, W = x.shape
    s = gain
    x6 = x.reshape(N, C, H // s, s, W // s, s)
    x6 = jnp.transpose(x6, (0, 3, 5, 1, 2, 4))
    return x6.reshape(N, C * s * s, H // s, W // s)


if __name__ == "__main__":
    key = jax.random.PRNGKey(0)
    gain = 2

    # Demo shape implied by the module: N, C, H, W = 2, 4, 16, 16
    N, C, H, W = 2, 4, 16, 16
    x = jax.random.normal(key, (N, C, H, W), jnp.float32)
    out = contract(x, gain=gain)
    jax.block_until_ready(out)
    ref = _reference(x, gain)
    assert out.shape == (N, C * gain * gain, H // gain, W // gain)
    assert jnp.allclose(out, ref), "Pallas Contract does not match reference"

    # Single image + row count not a multiple of the tile: exercises the >=2-step
    # grid split (v7x two-core case) and the masked partial-tile writeback.
    x_b = jax.random.normal(jax.random.PRNGKey(1), (1, 3, 12, 12), jnp.float32)
    out_b = contract(x_b, gain=gain)
    jax.block_until_ready(out_b)
    assert jnp.allclose(out_b, _reference(x_b, gain)), "partial-tile mismatch"

    print("KERNEL_OK")
</pallas_src>

<mosaic_0001>
module attributes {stable_mosaic.version = 11 : i64} {
  func.func @_contract_kernel(%arg0: i32, %arg1: i32, %arg2: memref<1x32x32xf32, #tpu.memory_space<vmem>>, %arg3: memref<16x256xf32, #tpu.memory_space<vmem>>, %arg4: memref<1x4x32x8xf32, #tpu.memory_space<vmem>>) attributes {dimension_semantics = [#tpu.dimension_semantics<parallel>, #tpu.dimension_semantics<parallel>], iteration_bounds = array<i64: 2, 1>, scalar_prefetch = 0 : i64, scratch_operands = 0 : i64, tpu.core_type = #tpu.core_type<tc>, window_params = [{transform_indices = @transform_0, window_bounds = array<i64: 1, 32, 32>}, {pipeline_mode = #tpu.pipeline_mode<synchronous>, transform_indices = @transform_1, window_bounds = array<i64: 16, 256>}, {transform_indices = @transform_2, window_bounds = array<i64: 1, 4, 32, 8>}]} {
    %c0 = arith.constant 0 : index
    %c0_0 = arith.constant 0 : index
    %c0_1 = arith.constant 0 : index
    %0 = vector.load %arg2[%c0, %c0_0, %c0_1] : memref<1x32x32xf32, #tpu.memory_space<vmem>>, vector<1x32x32xf32>
    %1 = vector.shape_cast %0 : vector<1x32x32xf32> to vector<32x32xf32>
    %c0_2 = arith.constant 0 : index
    %c0_3 = arith.constant 0 : index
    %2 = vector.load %arg3[%c0_2, %c0_3] : memref<16x256xf32, #tpu.memory_space<vmem>>, vector<16x256xf32>
    %3 = vector.extract_strided_slice %1 {offsets = [0, 0], sizes = [32, 16], strides = [1, 1]} : vector<32x32xf32> to vector<32x16xf32>
    %cst = arith.constant dense<0.000000e+00> : vector<32x256xf32>
    %4 = tpu.matmul %3, %2, %cst {dimension_numbers = #tpu.dot_dimension_numbers<[1], [0], [0], [1], [0, 0, 1, 1], [], []>} : vector<32x16xf32>, vector<16x256xf32>, vector<32x256xf32> -> vector<32x256xf32>
    %5 = vector.extract_strided_slice %4 {offsets = [0, 0], sizes = [32, 8], strides = [1, 1]} : vector<32x256xf32> to vector<32x8xf32>
    %c0_4 = arith.constant 0 : index
    %c0_5 = arith.constant 0 : index
    %c0_6 = arith.constant 0 : index
    %c0_7 = arith.constant 0 : index
    %6 = vector.load %arg4[%c0_4, %c0_5, %c0_6, %c0_7] : memref<1x4x32x8xf32, #tpu.memory_space<vmem>>, vector<1x1x32x8xf32>
    %7 = vector.shape_cast %6 : vector<1x1x32x8xf32> to vector<32x8xf32>
    %8 = vector.shape_cast %5 : vector<32x8xf32> to vector<1x1x32x8xf32>
    tpu.vector_store %arg4[%c0_4, %c0_5, %c0_6, %c0_7], %8 {strides = array<i32>} : memref<1x4x32x8xf32, #tpu.memory_space<vmem>>, vector<1x1x32x8xf32>,
    %9 = vector.extract_strided_slice %4 {offsets = [0, 128], sizes = [32, 8], strides = [1, 1]} : vector<32x256xf32> to vector<32x8xf32>
    %c0_8 = arith.constant 0 : index
    %c1 = arith.constant 1 : index
    %c0_9 = arith.constant 0 : index
    %c0_10 = arith.constant 0 : index
    %10 = vector.load %arg4[%c0_8, %c1, %c0_9, %c0_10] : memref<1x4x32x8xf32, #tpu.memory_space<vmem>>, vector<1x1x32x8xf32>
    %11 = vector.shape_cast %10 : vector<1x1x32x8xf32> to vector<32x8xf32>
    %12 = vector.shape_cast %9 : vector<32x8xf32> to vector<1x1x32x8xf32>
    tpu.vector_store %arg4[%c0_8, %c1, %c0_9, %c0_10], %12 {strides = array<i32>} : memref<1x4x32x8xf32, #tpu.memory_space<vmem>>, vector<1x1x32x8xf32>,
    %13 = vector.extract_strided_slice %1 {offsets = [0, 16], sizes = [32, 16], strides = [1, 1]} : vector<32x32xf32> to vector<32x16xf32>
    %cst_11 = arith.constant dense<0.000000e+00> : vector<32x256xf32>
    %14 = tpu.matmul %13, %2, %cst_11 {dimension_numbers = #tpu.dot_dimension_numbers<[1], [0], [0], [1], [0, 0, 1, 1], [], []>} : vector<32x16xf32>, vector<16x256xf32>, vector<32x256xf32> -> vector<32x256xf32>
    %15 = vector.extract_strided_slice %14 {offsets = [0, 0], sizes = [32, 8], strides = [1, 1]} : vector<32x256xf32> to vector<32x8xf32>
    %c0_12 = arith.constant 0 : index
    %c2 = arith.constant 2 : index
    %c0_13 = arith.constant 0 : index
    %c0_14 = arith.constant 0 : index
    %16 = vector.load %arg4[%c0_12, %c2, %c0_13, %c0_14] : memref<1x4x32x8xf32, #tpu.memory_space<vmem>>, vector<1x1x32x8xf32>
    %17 = vector.shape_cast %16 : vector<1x1x32x8xf32> to vector<32x8xf32>
    %18 = vector.shape_cast %15 : vector<32x8xf32> to vector<1x1x32x8xf32>
    tpu.vector_store %arg4[%c0_12, %c2, %c0_13, %c0_14], %18 {strides = array<i32>} : memref<1x4x32x8xf32, #tpu.memory_space<vmem>>, vector<1x1x32x8xf32>,
    %19 = vector.extract_strided_slice %14 {offsets = [0, 128], sizes = [32, 8], strides = [1, 1]} : vector<32x256xf32> to vector<32x8xf32>
    %c0_15 = arith.constant 0 : index
    %c3 = arith.constant 3 : index
    %c0_16 = arith.constant 0 : index
    %c0_17 = arith.constant 0 : index
    %20 = vector.load %arg4[%c0_15, %c3, %c0_16, %c0_17] : memref<1x4x32x8xf32, #tpu.memory_space<vmem>>, vector<1x1x32x8xf32>
    %21 = vector.shape_cast %20 : vector<1x1x32x8xf32> to vector<32x8xf32>
    %22 = vector.shape_cast %19 : vector<32x8xf32> to vector<1x1x32x8xf32>
    tpu.vector_store %arg4[%c0_15, %c3, %c0_16, %c0_17], %22 {strides = array<i32>} : memref<1x4x32x8xf32, #tpu.memory_space<vmem>>, vector<1x1x32x8xf32>,
    return
  }
  func.func @transform_0(%arg0: i32, %arg1: i32) -> (i32, i32, i32) {
    %c0_i32 = arith.constant 0 : i32
    %c0_i32_0 = arith.constant 0 : i32
    return %arg0, %arg1, %c0_i32 : i32, i32, i32
  }
  func.func @transform_1(%arg0: i32, %arg1: i32) -> (i32, i32) {
    %c0_i32 = arith.constant 0 : i32
    %c0_i32_0 = arith.constant 0 : i32
    %c0_i32_1 = arith.constant 0 : i32
    return %c0_i32, %c0_i32_0 : i32, i32
  }
  func.func @transform_2(%arg0: i32, %arg1: i32) -> (i32, i32, i32, i32) {
    %c0_i32 = arith.constant 0 : i32
    %c0_i32_0 = arith.constant 0 : i32
    %c0_i32_1 = arith.constant 0 : i32
    return %arg0, %c0_i32, %arg1, %c0_i32_0 : i32, i32, i32, i32
  }
}

</mosaic_0001>

<llo_original>
// kernel: contract.1
$region0: #{contract.1}
  #allocation0 [shape = 'u32[]', space=smem, size = 0x4, offset = 0x4, fixed_abs, tag = 'smem constant byte address 0x4 - core index']
  #allocation1 [shape = 'u32[144,128]{1,0:T(1,128)}', space=vmem, size = 0x12000, scoped, tag = 'internal scratch']
  %s0 = inlined_call_operand.vmem [shape: f32[2,32,32], index: 0, kind: input, shape index: {}]
  %s1 = inlined_call_operand.vmem [shape: f32[16,256], index: 1, kind: input, shape index: {}]
  %s2 = inlined_call_operand.vmem [shape: f32[2,4,32,8], index: 2, kind: output, shape index: {}]
  %s3 = sld [smem:[#allocation0]]
  $region41: #{contract.1} parent=0
    _
  %s5 = ssub.s32 1, %s3
  %s6 = scalar_select 0, %s5, %s3
  loop: start=0, step=1, limit=4
  $region2: #{contract.1} parent=0 // loop_pre_header
    _
  $region3: #{contract.1} parent=0 // loop_header
    %s8 = sphi 0, %s12
    %p9 = scmp.ge.s32.totalorder %s8, 4
    %s15 = sphi 0, %s27
    %s16 = sphi 0, %s23
    %s17 = sphi 0, %s15
    %s18 = sphi 0, %s16
    %s19 = sphi 0, %s17
    %s20 = sphi 0, %s18
    %s32 = sphi 0, %s34
    %s35 = sphi 0, %s32
    %s36 = sphi 0, %s35
    %s52 = sphi 0, %s36
    %s56 = sphi 0, %s56
    %s58 = sphi 0, %s56
    %s59 = sphi 0, %s58
    %s73 = sphi 0, %s59
    %s81 = sphi 0, %s83
    %s84 = sphi 0, %s81
    %s85 = sphi 0, %s84
    %s101 = sphi 0, %s85
  $region4: #{contract.1} parent=0 // loop_header_branch
    %11 = sbr.rel (%p9) target = $region8
  $region5: #{contract.1} parent=0 // loop_body
    %s13 = ssub.s32 %s8, 1
    %s14 = ssub.s32 %s8, 2
    %s21 = sadd.s32 1, %s16
    %p22 = scmp.ge.s32.totalorder %s21, 1
    %s23 = scalar_select %p22, 0, %s21
    %s24 = sadd.s32 1, %s15
    %s25 = scalar_select %p22, %s24, %s15
    %p26 = scmp.ge.s32.totalorder %s25, 2
    %s27 = scalar_select %p26, 0, %s25
    %s28 = ssub.s32 %s15, %s27
    %s29 = ssub.s32 %s16, %s23
    %s30 = sor.u32 %s28, %s29
    %p31 = scmp.eq.s32.totalorder %s30, 0
    %s33 = sadd.s32 %s32, 1
    %s34 = scalar_select %p31, %s32, %s33
    %p37 = pneg %p31
    %p38 = scmp.eq.s32.totalorder %s8, 1
    %p39 = por %p37, %p38
    %p40 = scmp.ne.s32.totalorder %s32, %s35
    %p41 = scmp.eq.s32.totalorder %s8, 0
    %p42 = por %p40, %p41
    %p43 = scmp.ne.s32.totalorder %s32, %s35
    %p44 = scmp.eq.s32.totalorder %s13, 1
    %p45 = por %p43, %p44
    %p46 = scmp.ne.s32.totalorder %s35, %s36
    %p47 = scmp.eq.s32.totalorder %s13, 0
    %p48 = por %p46, %p47
    %p49 = scmp.ne.s32.totalorder %s35, %s36
    %p50 = scmp.eq.s32.totalorder %s14, 1
    %p51 = por %p49, %p50
    %p53 = scmp.ne.s32.totalorder %s36, %s52
    %p54 = scmp.eq.s32.totalorder %s14, 0
    %p55 = por %p53, %p54
    %s57 = sadd.s32 %s56, 1
    %p60 = scmp.eq.s32.totalorder %s8, 1
    %p61 = scmp.ne.s32.totalorder %s56, %s58
    %p62 = scmp.eq.s32.totalorder %s8, 0
    %p63 = por %p61, %p62
    %p64 = scmp.ne.s32.totalorder %s56, %s58
    %p65 = scmp.eq.s32.totalorder %s13, 1
    %p66 = por %p64, %p65
    %p67 = scmp.ne.s32.totalorder %s58, %s59
    %p68 = scmp.eq.s32.totalorder %s13, 0
    %p69 = por %p67, %p68
    %p70 = scmp.ne.s32.totalorder %s58, %s59
    %p71 = scmp.eq.s32.totalorder %s14, 1
    %p72 = por %p70, %p71
    %p74 = scmp.ne.s32.totalorder %s59, %s73
    %p75 = scmp.eq.s32.totalorder %s14, 0
    %p76 = por %p74, %p75
    %s77 = ssub.s32 %s15, %s27
    %s78 = ssub.s32 %s16, %s23
    %s79 = sor.u32 %s77, %s78
    %p80 = scmp.eq.s32.totalorder %s79, 0
    %s82 = sadd.s32 %s81, 1
    %s83 = scalar_select %p80, %s81, %s82
    %p86 = pneg %p80
    %p87 = scmp.eq.s32.totalorder %s8, 1
    %p88 = por %p86, %p87
    %p89 = scmp.ne.s32.totalorder %s81, %s84
    %p90 = scmp.eq.s32.totalorder %s8, 0
    %p91 = por %p89, %p90
    %p92 = scmp.ne.s32.totalorder %s81, %s84
    %p93 = scmp.eq.s32.totalorder %s13, 1
    %p94 = por %p92, %p93
    %p95 = scmp.ne.s32.totalorder %s84, %s85
    %p96 = scmp.eq.s32.totalorder %s13, 0
    %p97 = por %p95, %p96
    %p98 = scmp.ne.s32.totalorder %s84, %s85
    %p99 = scmp.eq.s32.totalorder %s14, 1
    %p100 = por %p98, %p99
    %p102 = scmp.ne.s32.totalorder %s85, %s101
    %p103 = scmp.eq.s32.totalorder %s14, 0
    %p104 = por %p102, %p103
    %p105 = scmp.le.s32.totalorder 1, %s8
    %p106 = scmp.lt.s32.totalorder %s8, 3
    %p107 = pnand %p105, %p106
    %p108 = pneg %p107
    // Predicated region
    $region9: #{contract.1} parent=5 // pred_check
      _
    $region10: #{contract.1} parent=5 // pred_check_branch
      %110 = sbr.rel (%p107) target = $region12
    $region11: #{contract.1} parent=5 // pred_region
      %s111 = ssub.s32 %s8, 1
      // Predicated region
      $region13: #{contract.1} parent=11 // pred_check
        %p112 = pneg %p69
      $region14: #{contract.1} parent=11 // pred_check_branch
        %114 = sbr.rel (%p112) target = $region16
      $region15: #{contract.1} parent=11 // pred_region
        _
      $region16: #{contract.1} parent=11 // pred_fallthru
        _
    $region12: #{contract.1} parent=5 // pred_fallthru
      _
    %p115 = scmp.lt.s32.totalorder %s8, 2
    // Predicated region
    $region17: #{contract.1} parent=5 // pred_check
      %p116 = pneg %p115
    $region18: #{contract.1} parent=5 // pred_check_branch
      %118 = sbr.rel (%p116) target = $region20
    $region19: #{contract.1} parent=5 // pred_region
      // Predicated region
      $region21: #{contract.1} parent=19 // pred_check
        %p119 = pneg %p42
      $region22: #{contract.1} parent=19 // pred_check_branch
        %121 = sbr.rel (%p119) target = $region24
      $region23: #{contract.1} parent=19 // pred_region
        %s122 = smul.u32 4, %s16
        %p123 = scmp.lt.s32.totalorder %s15, 1
        %s124 = scalar_select %p123, %s15, 1
        %p125 = scmp.lt.s32.totalorder %s122, 3
        %s126 = scalar_select %p125, %s122, 3
        %s127 = smul.addr %s124, 4
        %s128 = sadd.s32 %s126, %s127
        %s129 = smul.addr %s128, 8
        %s130 = scalar_lea.vmem %s0, %s129
        %s131 = smul.u32 4, %s16
      $region24: #{contract.1} parent=19 // pred_fallthru
        _
    $region20: #{contract.1} parent=5 // pred_fallthru
      _
    %p132 = scmp.le.s32.totalorder 1, %s8
    %p133 = scmp.lt.s32.totalorder %s8, 3
    %p134 = pnand %p132, %p133
    %p135 = pneg %p134
    // Predicated region
    $region25: #{contract.1} parent=5 // pred_check
      _
    $region26: #{contract.1} parent=5 // pred_check_branch
      %137 = sbr.rel (%p134) target = $region28
    $region27: #{contract.1} parent=5 // pred_region
      %s138 = ssub.s32 %s8, 1
      %s139 = smul.u32 4, %s18
      %p140 = scmp.lt.s32.totalorder %s17, 1
      %s141 = scalar_select %p140, %s17, 1
      %p142 = scmp.lt.s32.totalorder %s139, 3
      %s143 = scalar_select %p142, %s139, 3
      %s144 = smul.addr %s141, 4
      %s145 = sadd.s32 %s143, %s144
      %s146 = smul.addr %s145, 8
      %s147 = scalar_lea.vmem %s0, %s146
      %p148 = pneg %p48
      %p149 = pneg %p45
      %p150 = pneg %p69
      %p151 = pneg %p66
      %p152 = pneg %p97
      %p153 = pneg %p94
      %s154 = smul.u32 4, %s18
      %p155 = scmp.lt.s32.totalorder %s17, 1
      %s156 = scalar_select %p155, %s17, 1
      %p157 = scmp.lt.s32.totalorder %s154, 3
      %s158 = scalar_select %p157, %s154, 3
      %s159 = smul.addr %s156, 16
      %s160 = sadd.s32 %s158, %s159
      %s161 = smul.addr %s160, 8
      %s162 = scalar_lea.vmem %s2, %s161
      %s163 = smul.u32 4, %s18
      %p164 = scmp.lt.s32.totalorder %s17, 1
      %s165 = scalar_select %p164, %s17, 1
      %p166 = scmp.lt.s32.totalorder %s163, 3
      %s167 = scalar_select %p166, %s163, 3
      %s168 = smul.addr %s165, 4
      %s169 = sadd.s32 %s167, %s168
      %s170 = smul.addr %s169, 8
      %s171 = scalar_lea.vmem %s0, %s170
      %s172 = smul.u32 4, %s18
      %s173 = smul.u32 4, %s18
      %p174 = scmp.lt.s32.totalorder %s17, 1
      %s175 = scalar_select %p174, %s17, 1
      %p176 = scmp.lt.s32.totalorder %s173, 3
      %s177 = scalar_select %p176, %s173, 3
      %s178 = smul.addr %s175, 16
      %s179 = sadd.s32 %s177, %s178
      %s180 = smul.addr %s179, 8
      %s181 = scalar_lea.vmem %s2, %s180
      %s182 = smul.u32 4, %s18
      %v183 = vld [vmem:[%s171] sm:$0xff]
      %v184 = vld [vmem:[%s171 + $0x8] sm:$0xff]
      %v185 = vld [vmem:[%s171 + $0x10] sm:$0xff]
      %v186 = vld [vmem:[%s171 + $0x18] sm:$0xff]
      %v187 = vld [vmem:[%s1] sm:$0xff]
      %v188 = vld [vmem:[%s1 + $0x8] sm:$0xff]
      %v189 = vld [vmem:[%s1 + $0x10] sm:$0xff]
      %v190 = vld [vmem:[%s1 + $0x18] sm:$0xff]
      %vm191 = vcmask 130048
      %v193 = vsel %vm191, %v183, 0
      %v196 = vsel %vm191, %v184, 0
      %v199 = vsel %vm191, %v185, 0
      %v202 = vsel %vm191, %v186, 0
      %204 = vmatprep.subr.mxu0 %v188
      %205 = vmatpush1.msra.mxu0 %v187
      %206 = vmatprep.subr.mxu0 %v190
      %207 = vmatpush1.msra.mxu0 %v189
      %208 = vmatprep.subr.mxu0 0.0
      %209 = vmatpush1.msra.mxu0 0.0
      %210 = vmatprep.subr.mxu0 0.0
      %211 = vmatpush1.msra.mxu0 0.0
      %212 = vmatprep.subr.mxu0 0.0
      %213 = vmatpush1.msra.mxu0 0.0
      %214 = vmatprep.subr.mxu0 0.0
      %215 = vmatpush1.msra.mxu0 0.0
      %216 = vmatprep.subr.mxu0 0.0
      %217 = vmatpush1.msra.mxu0 0.0
      %218 = vmatprep.subr.mxu0 0.0
      %219 = vmatpush1.msra.mxu0 0.0
      %220 = vmatprep.subr.mxu0 0.0
      %221 = vmatpush1.msra.mxu0 0.0
      %222 = vmatprep.subr.mxu0 0.0
      %223 = vmatpush1.msra.mxu0 0.0
      %224 = vmatprep.subr.mxu0 0.0
      %225 = vmatpush1.msra.mxu0 0.0
      %226 = vmatprep.subr.mxu0 0.0
      %227 = vmatpush1.msra.mxu0 0.0
      %228 = vmatprep.subr.mxu0 0.0
      %229 = vmatpush1.msra.mxu0 0.0
      %230 = vmatprep.subr.mxu0 0.0
      %231 = vmatpush1.msra.mxu0 0.0
      %232 = vmatprep.subr.mxu0 0.0
      %233 = vmatpush1.msra.mxu0 0.0
      %234 = vmatprep.subr.mxu0 0.0
      %235 = vmatpush1.msra.mxu0 0.0
      %236 = vmatprep.subr.mxu0 0.0
      %237 = vmatpush1.msra.mxu0 0.0
      %238 = vmatprep.subr.mxu0 0.0
      %239 = vmatpush1.msra.mxu0 0.0
      %240 = vmatprep.subr.mxu0 0.0
      %241 = vmatpush1.msra.mxu0 0.0
      %242 = vmatprep.subr.mxu0 0.0
      %243 = vmatpush1.msra.mxu0 0.0
      %244 = vmatprep.subr.mxu0 0.0
      %245 = vmatpush1.msra.mxu0 0.0
      %246 = vmatprep.subr.mxu0 0.0
      %247 = vmatpush1.msra.mxu0 0.0
      %248 = vmatprep.subr.mxu0 0.0
      %249 = vmatpush1.msra.mxu0 0.0
      %250 = vmatprep.subr.mxu0 0.0
      %251 = vmatpush1.msra.mxu0 0.0
      %252 = vmatprep.subr.mxu0 0.0
      %253 = vmatpush1.msra.mxu0 0.0
      %254 = vmatprep.subr.mxu0 0.0
      %255 = vmatpush1.msra.mxu0 0.0
      %256 = vmatprep.subr.mxu0 0.0
      %257 = vmatpush1.msra.mxu0 0.0
      %258 = vmatprep.subr.mxu0 0.0
      %259 = vmatpush1.msra.mxu0 0.0
      %260 = vmatprep.subr.mxu0 0.0
      %261 = vmatpush1.msra.mxu0 0.0
      %262 = vmatprep.subr.mxu0 0.0
      %263 = vmatpush1.msra.mxu0 0.0
      %264 = vmatprep.subr.mxu0 0.0
      %265 = vmatpush1.msra.mxu0 0.0
      %266 = vmatprep.subr.mxu0 0.0
      %267 = vmatpush1.msra.mxu0 0.0
      %268 = vmatprep.mubr.f32.mxu0 0.0
      %269 = vmatmul.mubr.f32.gmra.mrb[0].mxu0 %v193
      %v270 = vpop.f32.mrb[0].mxu0
      %v271 = vadd.f32 0.0, %v270
      %v272 = vpop.f32.mrb[0].mxu0
      %v273 = vadd.f32 0.0, %v272
      %274 = vmatprep.mubr.f32.mxu0 0.0
      %275 = vmatmul.mubr.f32.gmra.mrb[0].mxu0 %v196
      %v276 = vpop.f32.mrb[0].mxu0
      %v277 = vadd.f32 0.0, %v276
      %v278 = vpop.f32.mrb[0].mxu0
      %v279 = vadd.f32 0.0, %v278
      %280 = vmatprep.mubr.f32.mxu0 0.0
      %281 = vmatmul.mubr.f32.gmra.mrb[0].mxu0 %v199
      %v282 = vpop.f32.mrb[0].mxu0
      %v283 = vadd.f32 0.0, %v282
      %v284 = vpop.f32.mrb[0].mxu0
      %v285 = vadd.f32 0.0, %v284
      %286 = vmatprep.mubr.f32.mxu0 0.0
      %287 = vmatmul.mubr.f32.gmra.mrb[0].mxu0 %v202
      %v288 = vpop.f32.mrb[0].mxu0
      %v289 = vadd.f32 0.0, %v288
      %v290 = vpop.f32.mrb[0].mxu0
      %v291 = vadd.f32 0.0, %v290
      %292 = vdwg.mxu0
      %vm293 = vcmask 64512
      %294 = vst.msk [vmem:[%s181] sm:$0xff] %vm293, %v271
      %295 = vst.msk [vmem:[%s181 + $0x8] sm:$0xff] %vm293, %v277
      %296 = vst.msk [vmem:[%s181 + $0x10] sm:$0xff] %vm293, %v283
      %297 = vst.msk [vmem:[%s181 + $0x18] sm:$0xff] %vm293, %v289
      %s298 = scalar_lea.vmem %s181, 32
      %299 = vst.msk [vmem:[%s298] sm:$0xff] %vm293, %v273
      %300 = vst.msk [vmem:[%s298 + $0x8] sm:$0xff] %vm293, %v279
      %301 = vst.msk [vmem:[%s298 + $0x10] sm:$0xff] %vm293, %v285
      %302 = vst.msk [vmem:[%s298 + $0x18] sm:$0xff] %vm293, %v291
      %303 = vrot.lane.b32.xlu0 %v183, 112
      %v304 = vpop.permute.xlu0 %303
      %305 = vrot.lane.b32.xlu0 %v184, 112
      %v306 = vpop.permute.xlu0 %305
      %307 = vrot.lane.b32.xlu0 %v185, 112
      %v308 = vpop.permute.xlu0 %307
      %309 = vrot.lane.b32.xlu0 %v186, 112
      %v310 = vpop.permute.xlu0 %309
      %v311 = vsel %vm191, %v304, 0
      %v313 = vsel %vm191, %v306, 0
      %v315 = vsel %vm191, %v308, 0
      %v317 = vsel %vm191, %v310, 0
      %319 = vmatprep.subr.mxu0 %v188
      %320 = vmatpush1.msra.mxu0 %v187
      %321 = vmatprep.subr.mxu0 %v190
      %322 = vmatpush1.msra.mxu0 %v189
      %323 = vmatprep.subr.mxu0 0.0
      %324 = vmatpush1.msra.mxu0 0.0
      %325 = vmatprep.subr.mxu0 0.0
      %326 = vmatpush1.msra.mxu0 0.0
      %327 = vmatprep.subr.mxu0 0.0
      %328 = vmatpush1.msra.mxu0 0.0
      %329 = vmatprep.subr.mxu0 0.0
      %330 = vmatpush1.msra.mxu0 0.0
      %331 = vmatprep.subr.mxu0 0.0
      %332 = vmatpush1.msra.mxu0 0.0
      %333 = vmatprep.subr.mxu0 0.0
      %334 = vmatpush1.msra.mxu0 0.0
      %335 = vmatprep.subr.mxu0 0.0
      %336 = vmatpush1.msra.mxu0 0.0
      %337 = vmatprep.subr.mxu0 0.0
      %338 = vmatpush1.msra.mxu0 0.0
      %339 = vmatprep.subr.mxu0 0.0
      %340 = vmatpush1.msra.mxu0 0.0
      %341 = vmatprep.subr.mxu0 0.0
      %342 = vmatpush1.msra.mxu0 0.0
      %343 = vmatprep.subr.mxu0 0.0
      %344 = vmatpush1.msra.mxu0 0.0
      %345 = vmatprep.subr.mxu0 0.0
      %346 = vmatpush1.msra.mxu0 0.0
      %347 = vmatprep.subr.mxu0 0.0
      %348 = vmatpush1.msra.mxu0 0.0
      %349 = vmatprep.subr.mxu0 0.0
      %350 = vmatpush1.msra.mxu0 0.0
      %351 = vmatprep.subr.mxu0 0.0
      %352 = vmatpush1.msra.mxu0 0.0
      %353 = vmatprep.subr.mxu0 0.0
      %354 = vmatpush1.msra.mxu0 0.0
      %355 = vmatprep.subr.mxu0 0.0
      %356 = vmatpush1.msra.mxu0 0.0
      %357 = vmatprep.subr.mxu0 0.0
      %358 = vmatpush1.msra.mxu0 0.0
      %359 = vmatprep.subr.mxu0 0.0
      %360 = vmatpush1.msra.mxu0 0.0
      %361 = vmatprep.subr.mxu0 0.0
      %362 = vmatpush1.msra.mxu0 0.0
      %363 = vmatprep.subr.mxu0 0.0
      %364 = vmatpush1.msra.mxu0 0.0
      %365 = vmatprep.subr.mxu0 0.0
      %366 = vmatpush1.msra.mxu0 0.0
      %367 = vmatprep.subr.mxu0 0.0
      %368 = vmatpush1.msra.mxu0 0.0
      %369 = vmatprep.subr.mxu0 0.0
      %370 = vmatpush1.msra.mxu0 0.0
      %371 = vmatprep.subr.mxu0 0.0
      %372 = vmatpush1.msra.mxu0 0.0
      %373 = vmatprep.subr.mxu0 0.0
      %374 = vmatpush1.msra.mxu0 0.0
      %375 = vmatprep.subr.mxu0 0.0
      %376 = vmatpush1.msra.mxu0 0.0
      %377 = vmatprep.subr.mxu0 0.0
      %378 = vmatpush1.msra.mxu0 0.0
      %379 = vmatprep.subr.mxu0 0.0
      %380 = vmatpush1.msra.mxu0 0.0
      %381 = vmatprep.subr.mxu0 0.0
      %382 = vmatpush1.msra.mxu0 0.0
      %383 = vmatprep.mubr.f32.mxu0 0.0
      %384 = vmatmul.mubr.f32.gmra.mrb[0].mxu0 %v311
      %v385 = vpop.f32.mrb[0].mxu0
      %v386 = vadd.f32 0.0, %v385
      %v387 = vpop.f32.mrb[0].mxu0
      %v388 = vadd.f32 0.0, %v387
      %389 = vmatprep.mubr.f32.mxu0 0.0
      %390 = vmatmul.mubr.f32.gmra.mrb[0].mxu0 %v313
      %v391 = vpop.f32.mrb[0].mxu0
      %v392 = vadd.f32 0.0, %v391
      %v393 = vpop.f32.mrb[0].mxu0
      %v394 = vadd.f32 0.0, %v393
      %395 = vmatprep.mubr.f32.mxu0 0.0
      %396 = vmatmul.mubr.f32.gmra.mrb[0].mxu0 %v315
      %v397 = vpop.f32.mrb[0].mxu0
      %v398 = vadd.f32 0.0, %v397
      %v399 = vpop.f32.mrb[0].mxu0
      %v400 = vadd.f32 0.0, %v399
      %401 = vmatprep.mubr.f32.mxu0 0.0
      %402 = vmatmul.mubr.f32.gmra.mrb[0].mxu0 %v317
      %v403 = vpop.f32.mrb[0].mxu0
      %v404 = vadd.f32 0.0, %v403
      %v405 = vpop.f32.mrb[0].mxu0
      %v406 = vadd.f32 0.0, %v405
      %407 = vdwg.mxu0
      %s408 = scalar_lea.vmem %s181, 64
      %409 = vst.msk [vmem:[%s408] sm:$0xff] %vm293, %v386
      %410 = vst.msk [vmem:[%s408 + $0x8] sm:$0xff] %vm293, %v392
      %411 = vst.msk [vmem:[%s408 + $0x10] sm:$0xff] %vm293, %v398
      %412 = vst.msk [vmem:[%s408 + $0x18] sm:$0xff] %vm293, %v404
      %s413 = scalar_lea.vmem %s181, 96
      %414 = vst.msk [vmem:[%s413] sm:$0xff] %vm293, %v388
      %415 = vst.msk [vmem:[%s413 + $0x8] sm:$0xff] %vm293, %v394
      %416 = vst.msk [vmem:[%s413 + $0x10] sm:$0xff] %vm293, %v400
      %417 = vst.msk [vmem:[%s413 + $0x18] sm:$0xff] %vm293, %v406
      %s418 = smul.u32 4, %s18
      %p419 = scmp.lt.s32.totalorder %s17, 1
      %s420 = scalar_select %p419, %s17, 1
      %p421 = scmp.lt.s32.totalorder %s418, 3
      %s422 = scalar_select %p421, %s418, 3
      %s423 = smul.addr %s420, 16
      %s424 = sadd.s32 %s422, %s423
      %s425 = smul.addr %s424, 8
      %s426 = scalar_lea.vmem %s2, %s425
      // Predicated region
      $region29: #{contract.1} parent=27 // pred_check
        %p427 = pneg %p94
      $region30: #{contract.1} parent=27 // pred_check_branch
        %429 = sbr.rel (%p427) target = $region32
      $region31: #{contract.1} parent=27 // pred_region
        %s430 = smul.u32 4, %s18
      $region32: #{contract.1} parent=27 // pred_fallthru
        _
    $region28: #{contract.1} parent=5 // pred_fallthru
      _
    %p431 = scmp.le.s32.totalorder 2, %s8
    // Predicated region
    $region33: #{contract.1} parent=5 // pred_check
      %p432 = pneg %p431
    $region34: #{contract.1} parent=5 // pred_check_branch
      %434 = sbr.rel (%p432) target = $region36
    $region35: #{contract.1} parent=5 // pred_region
      %s435 = ssub.s32 %s8, 2
      // Predicated region
      $region37: #{contract.1} parent=35 // pred_check
        %p436 = pneg %p100
      $region38: #{contract.1} parent=35 // pred_check_branch
        %438 = sbr.rel (%p436) target = $region40
      $region39: #{contract.1} parent=35 // pred_region
        %s439 = smul.u32 4, %s20
        %p440 = scmp.lt.s32.totalorder %s19, 1
        %s441 = scalar_select %p440, %s19, 1
        %p442 = scmp.lt.s32.totalorder %s439, 3
        %s443 = scalar_select %p442, %s439, 3
        %s444 = smul.addr %s441, 16
        %s445 = sadd.s32 %s443, %s444
        %s446 = smul.addr %s445, 8
        %s447 = scalar_lea.vmem %s2, %s446
      $region40: #{contract.1} parent=35 // pred_fallthru
        _
    $region36: #{contract.1} parent=5 // pred_fallthru
      _
  $region6: #{contract.1} parent=0 // loop_footer
    %s12 = sadd.s32 1, %s8
  $region7: #{contract.1} parent=0 // loop_footer_branch
    %7 = sbr.rel target = $region3
  $region8: #{contract.1} parent=0 // loop_exit
    _

</llo_original>
